<compile_context>
chip_gen: v5e
topology: v5e:2x2
jax: 0.10.0
libtpu: 0.0.40
codegen_flags: <defaults>
</compile_context>

<pallas_src>
import jax
import jax.numpy as jnp
from jax.experimental import pallas as pl
from jax.experimental.pallas import tpu as pltpu

EPS = 1e-5
C_IN = 2               # input channels
C_OUT = 4              # output channels of the grouped conv
K = 3                  # kernel size of the grouped conv
L_IN = 4               # input length
L_OUT = L_IN - K + 1   # = 2


def fused_bn_conv_kernel(slab_ref, o_ref):
    # slab_ref: (4, 10) packed f32 slab, rows = output channels [c0, c0, c1, c1]:
    #   [:, 0:4]   input rows replicated per output channel
    #   [:, 4:7]   grouped-conv weight (out_ch, k)
    #   [:, 7:8]   grouped-conv bias
    #   [:, 8:9]   folded BN*1x1 scale  (gamma * w2)
    #   [:, 9:10]  folded BN*1x1 shift  (beta * w2 + b2)
    # o_ref: (4, 2) output (C_out, L_out)
    slab = slab_ref[...]                                    # (4, 10) f32
    x = slab[:, 0:4]                                        # (4, 4)
    w = slab[:, 4:7]                                        # (4, 3)
    b = slab[:, 7:8]                                        # (4, 1)
    scale = slab[:, 8:9]                                    # (4, 1)
    shift = slab[:, 9:10]                                   # (4, 1)

    # --- BatchNorm1d(2), training mode: batch stats over (N*L) per channel ---
    # (replicated rows carry identical per-channel stats, so this is exact)
    mean = jnp.mean(x, axis=1, keepdims=True)               # (4, 1)
    diff = x - mean
    var = jnp.mean(diff * diff, axis=1, keepdims=True)      # biased variance
    y = diff * jax.lax.rsqrt(var + EPS) * scale + shift     # BN + folded 1x1 conv

    # --- Conv1d(2, 4, 3, groups=2) as K shifted-slice VPU FMAs (no concat) ---
    out = (b
           + w[:, 0:1] * y[:, 0:2]
           + w[:, 1:2] * y[:, 1:3]
           + w[:, 2:3] * y[:, 2:4])                         # (4, 2)
    o_ref[...] = out.astype(o_ref.dtype)


def _pack_slab(x, params):
    """Fold the 1x1 conv into the BN affine and pack everything into (4, 10)."""
    x2d = x[0]                                              # (2, 4)
    gamma = params["bn_gamma"]                              # (2,)
    beta = params["bn_beta"]                                # (2,)
    w2 = params["c_w"].reshape(C_IN)                        # from (2,1,1)
    b2 = params["c_b"].reshape(C_IN)                        # (2,)
    scale = gamma * w2                                      # (2,)
    shift = beta * w2 + b2                                  # (2,)

    rep = C_OUT // C_IN                                     # out ch o reads in ch o//2
    x_rep = jnp.repeat(x2d, rep, axis=0)                    # (4, 4)
    scale_r = jnp.repeat(scale, rep)[:, None]               # (4, 1)
    shift_r = jnp.repeat(shift, rep)[:, None]               # (4, 1)
    w = params["conv_w"].reshape(C_OUT, K)                  # from (4,1,3)
    b = params["conv_b"].reshape(C_OUT, 1)                  # (4, 1)
    return jnp.concatenate([x_rep, w, b, scale_r, shift_r], axis=1)  # (4, 10)


@jax.jit
def model_forward(x, params):
    """x: (1, 2, 4) float32, NCL. Returns (1, 4, 2) float32."""
    slab = _pack_slab(x, params).astype(jnp.float32)

    vmem = pl.BlockSpec(memory_space=pltpu.MemorySpace.VMEM)
    out2d = pl.pallas_call(
        fused_bn_conv_kernel,
        out_shape=jax.ShapeDtypeStruct((C_OUT, L_OUT), jnp.float32),
        in_specs=[vmem],
        out_specs=vmem,
        cost_estimate=pl.CostEstimate(
            flops=60, transcendentals=4, bytes_accessed=200),
        compiler_params=pltpu.CompilerParams(allow_input_fusion=[True]),
    )(slab)

    return out2d[None]                                      # (1, 4, 2)


def init_params(key):
    k1, k2, k3, k4 = jax.random.split(key, 4)
    return {
        # BatchNorm1d(2): gamma=1, beta=0 (PyTorch default)
        "bn_gamma": jnp.ones((C_IN,), jnp.float32),
        "bn_beta": jnp.zeros((C_IN,), jnp.float32),
        # Conv1d(1, 2, 1): weight (2,1,1), bias (2,)
        "c_w": jax.random.normal(k1, (C_IN, 1, 1), jnp.float32) * 0.5,
        "c_b": jax.random.normal(k2, (C_IN,), jnp.float32) * 0.1,
        # Conv1d(2, 4, 3, groups=2): weight (4,1,3), bias (4,)
        "conv_w": jax.random.normal(k3, (C_OUT, 1, K), jnp.float32) * 0.3,
        "conv_b": jax.random.normal(k4, (C_OUT,), jnp.float32) * 0.1,
    }


if __name__ == "__main__":
    key = jax.random.PRNGKey(0)
    kx, kp = jax.random.split(key)
    x1 = jax.random.normal(kx, (1, 2, 4), jnp.float32)      # torch.randn(1, 2, 4)
    params = init_params(kp)

    out = model_forward(x1, params)
    out = jax.block_until_ready(out)
    assert out.shape == (1, C_OUT, L_OUT) and out.dtype == jnp.float32
    assert bool(jnp.all(jnp.isfinite(out)))
    print("KERNEL_OK")
</pallas_src>

<mosaic_0001>
module attributes {stable_mosaic.version = 11 : i64} {
  func.func @fused_bn_conv_kernel(%arg0: memref<4x10xf32, #tpu.memory_space<vmem>>, %arg1: memref<4x2xf32, #tpu.memory_space<vmem>>) attributes {dimension_semantics = [], scalar_prefetch = 0 : i64, scratch_operands = 0 : i64, tpu.core_type = #tpu.core_type<tc>} {
    %c0 = arith.constant 0 : index
    %c0_0 = arith.constant 0 : index
    %0 = vector.load %arg0[%c0, %c0_0] : memref<4x10xf32, #tpu.memory_space<vmem>>, vector<4x10xf32>
    %1 = vector.extract_strided_slice %0 {offsets = [0, 0], sizes = [4, 4], strides = [1, 1]} : vector<4x10xf32> to vector<4x4xf32>
    %2 = vector.extract_strided_slice %0 {offsets = [0, 4], sizes = [4, 3], strides = [1, 1]} : vector<4x10xf32> to vector<4x3xf32>
    %3 = vector.extract_strided_slice %0 {offsets = [0, 7], sizes = [4, 1], strides = [1, 1]} : vector<4x10xf32> to vector<4x1xf32>
    %4 = vector.extract_strided_slice %0 {offsets = [0, 8], sizes = [4, 1], strides = [1, 1]} : vector<4x10xf32> to vector<4x1xf32>
    %5 = vector.extract_strided_slice %0 {offsets = [0, 9], sizes = [4, 1], strides = [1, 1]} : vector<4x10xf32> to vector<4x1xf32>
    %cst = arith.constant dense<0.000000e+00> : vector<4xf32>
    %6 = vector.multi_reduction <add>, %1, %cst [1] : vector<4x4xf32> to vector<4xf32>
    %7 = vector.shape_cast %6 : vector<4xf32> to vector<4x1xf32>
    %cst_1 = arith.constant 4.000000e+00 : f32
    %8 = vector.broadcast %cst_1 : f32 to vector<4x1xf32>
    %9 = arith.divf %7, %8 : vector<4x1xf32>
    %10 = vector.broadcast %9 : vector<4x1xf32> to vector<4x4xf32>
    %11 = arith.subf %1, %10 : vector<4x4xf32>
    %12 = arith.mulf %11, %11 : vector<4x4xf32>
    %cst_2 = arith.constant dense<0.000000e+00> : vector<4xf32>
    %13 = vector.multi_reduction <add>, %12, %cst_2 [1] : vector<4x4xf32> to vector<4xf32>
    %14 = vector.shape_cast %13 : vector<4xf32> to vector<4x1xf32>
    %cst_3 = arith.constant 4.000000e+00 : f32
    %15 = vector.broadcast %cst_3 : f32 to vector<4x1xf32>
    %16 = arith.divf %14, %15 : vector<4x1xf32>
    %cst_4 = arith.constant 9.99999974E-6 : f32
    %17 = vector.broadcast %cst_4 : f32 to vector<4x1xf32>
    %18 = arith.addf %16, %17 : vector<4x1xf32>
    %19 = math.rsqrt %18 : vector<4x1xf32>
    %20 = vector.broadcast %19 : vector<4x1xf32> to vector<4x4xf32>
    %21 = arith.mulf %11, %20 : vector<4x4xf32>
    %22 = vector.broadcast %4 : vector<4x1xf32> to vector<4x4xf32>
    %23 = arith.mulf %21, %22 : vector<4x4xf32>
    %24 = vector.broadcast %5 : vector<4x1xf32> to vector<4x4xf32>
    %25 = arith.addf %23, %24 : vector<4x4xf32>
    %26 = vector.extract_strided_slice %2 {offsets = [0, 0], sizes = [4, 1], strides = [1, 1]} : vector<4x3xf32> to vector<4x1xf32>
    %27 = vector.extract_strided_slice %25 {offsets = [0, 0], sizes = [4, 2], strides = [1, 1]} : vector<4x4xf32> to vector<4x2xf32>
    %28 = vector.broadcast %26 : vector<4x1xf32> to vector<4x2xf32>
    %29 = arith.mulf %28, %27 : vector<4x2xf32>
    %30 = vector.broadcast %3 : vector<4x1xf32> to vector<4x2xf32>
    %31 = arith.addf %30, %29 : vector<4x2xf32>
    %32 = vector.extract_strided_slice %2 {offsets = [0, 1], sizes = [4, 1], strides = [1, 1]} : vector<4x3xf32> to vector<4x1xf32>
    %33 = vector.extract_strided_slice %25 {offsets = [0, 1], sizes = [4, 2], strides = [1, 1]} : vector<4x4xf32> to vector<4x2xf32>
    %34 = vector.broadcast %32 : vector<4x1xf32> to vector<4x2xf32>
    %35 = arith.mulf %34, %33 : vector<4x2xf32>
    %36 = arith.addf %31, %35 : vector<4x2xf32>
    %37 = vector.extract_strided_slice %2 {offsets = [0, 2], sizes = [4, 1], strides = [1, 1]} : vector<4x3xf32> to vector<4x1xf32>
    %38 = vector.extract_strided_slice %25 {offsets = [0, 2], sizes = [4, 2], strides = [1, 1]} : vector<4x4xf32> to vector<4x2xf32>
    %39 = vector.broadcast %37 : vector<4x1xf32> to vector<4x2xf32>
    %40 = arith.mulf %39, %38 : vector<4x2xf32>
    %41 = arith.addf %36, %40 : vector<4x2xf32>
    %c0_5 = arith.constant 0 : index
    %c0_6 = arith.constant 0 : index
    %42 = vector.load %arg1[%c0_5, %c0_6] : memref<4x2xf32, #tpu.memory_space<vmem>>, vector<4x2xf32>
    tpu.vector_store %arg1[%c0_5, %c0_6], %41 {strides = array<i32>} : memref<4x2xf32, #tpu.memory_space<vmem>>, vector<4x2xf32>,
    return
  }
}

</mosaic_0001>

<llo_original>
// kernel: model_forward.1
$region0: #{model_forward.1}
  #allocation0 [shape = 'u32[]', space=smem, size = 0x4, offset = 0x4, fixed_abs, tag = 'smem constant byte address 0x4 - core index']
  #allocation1 [shape = 'u32[72,128]{1,0:T(1,128)}', space=vmem, size = 0x9000, scoped, tag = 'internal scratch']
  %s0 = inlined_call_operand.vmem [shape: f32[4,10], index: 0, kind: input, shape index: {}]
  %s1 = inlined_call_operand.vmem [shape: f32[4,2], index: 1, kind: output, shape index: {}]
  %s2 = sld [smem:[#allocation0]]
  $region14: #{model_forward.1} parent=0
    _
  %s4 = ssub.s32 1, %s2
  %s5 = scalar_select 0, %s4, %s2
  // Predicated region
  $region2: #{model_forward.1} parent=0 // pred_check
    _
  $region3: #{model_forward.1} parent=0 // pred_check_branch
    %7 = sbr.rel (0) target = $region5
  $region4: #{model_forward.1} parent=0 // pred_region
    _
  $region5: #{model_forward.1} parent=0 // pred_fallthru
    _
  %v8 = vld [vmem:[%s0] sm:$0xf]
  %vm9 = vcmask 27648
  %v10 = vsel %vm9, %v8, 0.0
  %11 = vadd.xlane.f32.xlu0 %v10
  %v12 = vpop.xlane.xlu0 %11
  %v13 = vrcp.pop 4.0
  %v14 = vmul.f32 4.0, %v13
  %v15 = vsub.f32 1.0, %v14
  %v16 = vmul.f32 %v13, %v15
  %v17 = vadd.f32 %v13, %v16
  %vm18 = vweird.f32 %v13
  %v19 = vsel %vm18, %v13, %v17
  %v20 = vmul.f32 %v12, %v19
  %v21 = vsub.f32 %v8, %v20
  %v22 = vmul.f32 %v21, %v21
  %v23 = vsel %vm9, %v22, 0.0
  %24 = vadd.xlane.f32.xlu0 %v23
  %v25 = vpop.xlane.xlu0 %24
  %v26 = vmul.f32 %v25, %v19
  %v27 = vadd.f32 %v26, 1e-05
  %v28 = vrsqrt.pop %v27
  %v29 = vmul.f32 %v28, %v27
  %v30 = vmul.f32 %v29, %v28
  %v31 = vmul.f32 0.5, %v30
  %v32 = vsub.f32 1.5, %v31
  %v33 = vmul.f32 %v28, %v32
  %vm34 = vweird.f32 %v27
  %vm35 = vweird.f32 %v28
  %vm36 = vmor %vm34, %vm35
  %v37 = vsel %vm36, %v28, %v33
  %v38 = vmul.f32 %v21, %v37
  %40 = vset.pattern.permute.xlu0 8
  %41 = vperm.xlu0 %40, %v8
  %v42 = vpop.permute.xlu0 %41
  %v44 = vmul.f32 %v38, %v42
  %45 = vset.pattern.permute.xlu0 9
  %46 = vperm.xlu0 %45, %v8
  %v47 = vpop.permute.xlu0 %46
  %v49 = vadd.f32 %v44, %v47
  %50 = vset.pattern.permute.xlu0 4
  %51 = vperm.xlu0 %50, %v8
  %v52 = vpop.permute.xlu0 %51
  %v54 = vmul.f32 %v52, %v49
  %55 = vset.pattern.permute.xlu0 7
  %56 = vperm.xlu0 %55, %v8
  %v57 = vpop.permute.xlu0 %56
  %v59 = vadd.f32 %v57, %v54
  %60 = vset.pattern.permute.xlu0 5
  %61 = vperm.xlu0 %60, %v8
  %v62 = vpop.permute.xlu0 %61
  %v64 = vmul.f32 %v62, %v49
  %66 = vrot.lane.b32.xlu0 %v64, 127
  %v67 = vpop.permute.xlu0 %66
  %v69 = vadd.f32 %v59, %v67
  %70 = vset.pattern.permute.xlu0 6
  %71 = vperm.xlu0 %70, %v8
  %v72 = vpop.permute.xlu0 %71
  %v74 = vmul.f32 %v72, %v49
  %76 = vrot.lane.b32.xlu0 %v74, 126
  %v77 = vpop.permute.xlu0 %76
  %v79 = vadd.f32 %v69, %v77
  %vm80 = vcmask 11264
  %81 = vst.msk [vmem:[%s1] sm:$0xf] %vm80, %v79
  // Predicated region
  $region6: #{model_forward.1} parent=0 // pred_check
    _
  $region7: #{model_forward.1} parent=0 // pred_check_branch
    %83 = sbr.rel (0) target = $region9
  $region8: #{model_forward.1} parent=0 // pred_region
    _
  $region9: #{model_forward.1} parent=0 // pred_fallthru
    _
  // Predicated region
  $region10: #{model_forward.1} parent=0 // pred_check
    _
  $region11: #{model_forward.1} parent=0 // pred_check_branch
    %85 = sbr.rel (0) target = $region13
  $region12: #{model_forward.1} parent=0 // pred_region
    _
  $region13: #{model_forward.1} parent=0 // pred_fallthru
    _

</llo_original>
